<compile_context>
chip_gen: v7x
topology: tpu7x:2x2x1
jax: 0.10.0
libtpu: 0.0.40
codegen_flags: <defaults>
</compile_context>

<pallas_src>
import enum
import functools

import jax
import jax.numpy as jnp
from jax.experimental import pallas as pl
from jax.experimental.pallas import tpu as pltpu


class Axis(enum.Enum):
    X = 1
    Y = 0


# ----------------------------------------------------------------------------
# VMEM-aware, generation-aware tile sizing.
# ----------------------------------------------------------------------------

def _round_up(x: int, m: int) -> int:
    return ((x + m - 1) // m) * m


def _sublane_align(dtype) -> int:
    """Sublane packing multiple for a dtype (8 for f32, 16 for bf16, ...)."""
    return max(8, 32 // jnp.dtype(dtype).itemsize)


def _is_pow2(n: int) -> bool:
    return n > 0 and (n & (n - 1)) == 0


@functools.lru_cache(maxsize=None)
def _vmem_capacity_bytes() -> int:
    try:
        return int(pltpu.get_tpu_info().vmem_capacity_bytes)
    except Exception:
        return 64 << 20  # conservative fallback == v7x per-TC VMEM


def _budgets(n_live_tiles: int):
    """(vmem_limit_bytes, per-tile byte budget) for `n_live_tiles` streamed arrays.

    Each streamed array is double-buffered by the BlockSpec pipeline, so live
    VMEM ~= 2 * n_live_tiles * tile_bytes; keep ~1 tile of headroom.
    ~45 MiB limit / ~9 MiB single-axis tile on v7x; ~90 MiB / ~18 MiB on v5e/v6e.
    """
    cap = _vmem_capacity_bytes()
    vmem_limit = min(int(0.70 * cap), 96 << 20)
    budget = vmem_limit // (2 * n_live_tiles + 1)
    return vmem_limit, budget


def _pick_rows(nc: int, row_bytes: int, budget: int, sublane: int,
               min_steps: int = 4) -> int:
    """Rows per block for the flattened (N*C, H*W) layout.

    Fits the budget, keeps >= ~min_steps grid steps when nc allows (v7x
    2-TensorCore sharding + pipeline overlap), and respects the (8,128) rule on
    the second-to-last block dim (multiple of `sublane`, or the full dim).
    """
    b = max(1, min(nc, budget // max(row_bytes, 1)))
    b = min(b, max(1, pl.cdiv(nc, min_steps)))
    if b >= nc:
        return nc
    b = max(sublane, (b // sublane) * sublane)
    return min(b, nc)


# ----------------------------------------------------------------------------
# Kernels.
# ----------------------------------------------------------------------------

def _flat_dx(u, h, w):
    """X derivative on a (rows, H*W) flattened block.  Requires W power of two.

    roll by -1 is correct everywhere except the last column of each row, where
    the periodic-in-W wrap must come from the start of the *same* row
    (= roll by +(W-1)).  Row-end mask via bitwise AND (VPU), no extra stores.
    """
    hw = h * w
    nxt = pltpu.roll(u, shift=hw - 1, axis=1)   # u[(k+1) % (h*w)]
    wrap = pltpu.roll(u, shift=w - 1, axis=1)   # u[k-(w-1)] == row start at row ends
    lane = jax.lax.broadcasted_iota(jnp.int32, u.shape, 1)
    at_row_end = (lane & (w - 1)) == (w - 1)
    return jnp.where(at_row_end, wrap, nxt) - u


def _fv_flat_x_kernel(u_ref, o_ref, *, h, w):
    o_ref[...] = _flat_dx(u_ref[...], h, w)


def _fv_flat_y_kernel(u_ref, o_ref, *, h, w):
    u = u_ref[...]
    # roll by -W on the flattened axis == periodic +1-row shift (wrap included).
    o_ref[...] = pltpu.roll(u, shift=h * w - w, axis=1) - u


def _fv_flat_both_kernel(u_ref, dx_ref, dy_ref, *, h, w):
    u = u_ref[...]
    dy_ref[...] = pltpu.roll(u, shift=h * w - w, axis=1) - u
    dx_ref[...] = _flat_dx(u, h, w)


def _fv_axis_kernel(u_ref, o_ref, *, kaxis, size):
    """3D fallback: out = roll(u, -1, kaxis) - u with the derivative axis whole."""
    u = u_ref[...]
    o_ref[...] = pltpu.roll(u, shift=size - 1, axis=kaxis) - u


def _fv_both_3d_kernel(u_ref, dx_ref, dy_ref, *, h, w):
    u = u_ref[...]
    dx_ref[...] = pltpu.roll(u, shift=w - 1, axis=2) - u  # Axis.X: along W
    dy_ref[...] = pltpu.roll(u, shift=h - 1, axis=1) - u  # Axis.Y: along H


# ----------------------------------------------------------------------------
# Module.
# ----------------------------------------------------------------------------

class FiniteVolumes:
    """Periodic finite-volume derivative (u[i+1]-u[i]) as Pallas TPU kernels."""

    def __call__(self, u: jax.Array, axis: Axis) -> jax.Array:
        return self.forward(u, axis)

    # ---------------- single-axis derivative (matches the module API) --------
    def forward(self, u: jax.Array, axis: Axis) -> jax.Array:
        assert u.ndim == 4, "expected NCHW input"
        n, c, h, w = u.shape
        nc, hw = n * c, h * w
        itemsize = jnp.dtype(u.dtype).itemsize
        sublane = _sublane_align(u.dtype)
        vmem_limit, budget = _budgets(n_live_tiles=2)  # in + out

        # Lane-dense flattened path: (nc, h*w) view, last dim large & dense.
        row_bytes = _round_up(hw, 128) * itemsize
        flat_ok = (sublane * row_bytes <= budget) and (axis == Axis.Y or _is_pow2(w))
        if flat_ok:
            u2 = u.reshape(nc, hw)
            b_nc = _pick_rows(nc, row_bytes, budget, sublane)
            spec = pl.BlockSpec((b_nc, hw), lambda i: (i, 0))
            kern = _fv_flat_y_kernel if axis == Axis.Y else _fv_flat_x_kernel
            out2 = pl.pallas_call(
                functools.partial(kern, h=h, w=w),
                out_shape=jax.ShapeDtypeStruct(u2.shape, u2.dtype),
                grid=(pl.cdiv(nc, b_nc),),
                in_specs=[spec],
                out_specs=spec,
                compiler_params=pltpu.CompilerParams(
                    dimension_semantics=("parallel",),
                    vmem_limit_bytes=vmem_limit),
            )(u2)
            return out2.reshape(u.shape)

        return self._forward_axis_3d(u, axis, budget, vmem_limit)

    # Big-slab / non-pow2-W fallback: derivative axis kept whole in the block.
    def _forward_axis_3d(self, u, axis, budget, vmem_limit):
        n, c, h, w = u.shape
        nc = n * c
        u3 = u.reshape(nc, h, w)
        itemsize = jnp.dtype(u.dtype).itemsize
        sublane = _sublane_align(u.dtype)
        padded_slab = _round_up(h, sublane) * _round_up(w, 128) * itemsize

        if axis == Axis.X:
            kaxis, size = 2, w
            if padded_slab <= budget:
                b_nc = max(1, min(nc, budget // padded_slab, pl.cdiv(nc, 4)))
                b_h = h
            else:
                b_nc = 1
                max_b_h = budget // (_round_up(w, 128) * itemsize)
                b_h = min(h, max(sublane, (max_b_h // sublane) * sublane))
            block = (b_nc, b_h, w)           # W whole (periodic wrap)
            grid = (pl.cdiv(nc, b_nc), pl.cdiv(h, b_h))
            index_map = lambda i, j: (i, j, 0)
        else:
            kaxis, size = 1, h
            if padded_slab <= budget:
                b_nc = max(1, min(nc, budget // padded_slab, pl.cdiv(nc, 4)))
                b_w = w
            else:
                b_nc = 1
                max_b_w = budget // (_round_up(h, sublane) * itemsize)
                b_w = min(w, max(128, (max_b_w // 128) * 128))
            block = (b_nc, h, b_w)           # H whole (periodic wrap)
            grid = (pl.cdiv(nc, b_nc), pl.cdiv(w, b_w))
            index_map = lambda i, j: (i, 0, j)

        kernel = functools.partial(_fv_axis_kernel, kaxis=kaxis, size=size)
        out3 = pl.pallas_call(
            kernel,
            out_shape=jax.ShapeDtypeStruct(u3.shape, u3.dtype),
            grid=grid,
            in_specs=[pl.BlockSpec(block, index_map)],
            out_specs=pl.BlockSpec(block, index_map),
            compiler_params=pltpu.CompilerParams(
                dimension_semantics=("parallel", "parallel"),
                vmem_limit_bytes=vmem_limit),
        )(u3)
        return out3.reshape(u.shape)

    # ---------------- fused X+Y derivative (1 HBM read, 2 writes) ------------
    def forward_both(self, u: jax.Array):
        assert u.ndim == 4, "expected NCHW input"
        n, c, h, w = u.shape
        nc, hw = n * c, h * w
        itemsize = jnp.dtype(u.dtype).itemsize
        sublane = _sublane_align(u.dtype)
        vmem_limit, budget = _budgets(n_live_tiles=3)  # in + dx + dy

        row_bytes = _round_up(hw, 128) * itemsize
        if sublane * row_bytes <= budget and _is_pow2(w):
            # Lane-dense flattened fused path: 1 read, 2 lane-dense writes.
            u2 = u.reshape(nc, hw)
            b_nc = _pick_rows(nc, row_bytes, budget, sublane)
            spec = pl.BlockSpec((b_nc, hw), lambda i: (i, 0))
            dx2, dy2 = pl.pallas_call(
                functools.partial(_fv_flat_both_kernel, h=h, w=w),
                out_shape=(jax.ShapeDtypeStruct(u2.shape, u2.dtype),
                           jax.ShapeDtypeStruct(u2.shape, u2.dtype)),
                grid=(pl.cdiv(nc, b_nc),),
                in_specs=[spec],
                out_specs=(spec, spec),
                compiler_params=pltpu.CompilerParams(
                    dimension_semantics=("parallel",),
                    vmem_limit_bytes=vmem_limit),
            )(u2)
            return dx2.reshape(u.shape), dy2.reshape(u.shape)

        padded_slab = _round_up(h, sublane) * _round_up(w, 128) * itemsize
        if padded_slab <= budget:
            # Fused 3D path: both spatial axes whole per block (periodic rolls).
            u3 = u.reshape(nc, h, w)
            b_nc = max(1, min(nc, budget // padded_slab, pl.cdiv(nc, 4)))
            spec = pl.BlockSpec((b_nc, h, w), lambda i: (i, 0, 0))
            dx3, dy3 = pl.pallas_call(
                functools.partial(_fv_both_3d_kernel, h=h, w=w),
                out_shape=(jax.ShapeDtypeStruct(u3.shape, u3.dtype),
                           jax.ShapeDtypeStruct(u3.shape, u3.dtype)),
                grid=(pl.cdiv(nc, b_nc),),
                in_specs=[spec],
                out_specs=(spec, spec),
                compiler_params=pltpu.CompilerParams(
                    dimension_semantics=("parallel",),
                    vmem_limit_bytes=vmem_limit),
            )(u3)
            return dx3.reshape(u.shape), dy3.reshape(u.shape)

        # Very large slabs: two single-axis streaming kernels (each fits VMEM).
        # TODO(synk): halo-tiled fused kernel for slabs that exceed VMEM.
        return self.forward(u, Axis.X), self.forward(u, Axis.Y)


# ----------------------------------------------------------------------------
# Reference & self-test.
# ----------------------------------------------------------------------------

def _reference(u: jax.Array, axis: Axis) -> jax.Array:
    ax = 3 if axis == Axis.X else 2
    return jnp.roll(u, shift=-1, axis=ax) - u


if __name__ == "__main__":
    key = jax.random.PRNGKey(0)
    u = jax.random.normal(key, (2, 4, 16, 16), dtype=jnp.float32)

    fv = FiniteVolumes()

    # Fused path (preferred when both derivatives are needed).
    dx_f, dy_f = fv.forward_both(u)

    # Single-axis paths (module API).
    dx = fv(u, Axis.X)
    dy = fv(u, Axis.Y)

    jax.block_until_ready((dx_f, dy_f, dx, dy))

    ref_x = _reference(u, Axis.X)
    ref_y = _reference(u, Axis.Y)

    assert dx.shape == u.shape and dx.dtype == u.dtype
    assert jnp.allclose(dx, ref_x, atol=1e-6), "X-derivative mismatch"
    assert jnp.allclose(dy, ref_y, atol=1e-6), "Y-derivative mismatch"
    assert jnp.allclose(dx_f, ref_x, atol=1e-6), "fused X-derivative mismatch"
    assert jnp.allclose(dy_f, ref_y, atol=1e-6), "fused Y-derivative mismatch"

    print("KERNEL_OK")
</pallas_src>

<mosaic_0001>
module attributes {stable_mosaic.version = 11 : i64} {
  func.func @_fv_flat_both_kernel(%arg0: i32, %arg1: memref<8x256xf32, #tpu.memory_space<vmem>>, %arg2: memref<8x256xf32, #tpu.memory_space<vmem>>, %arg3: memref<8x256xf32, #tpu.memory_space<vmem>>) attributes {dimension_semantics = [#tpu.dimension_semantics<parallel>], iteration_bounds = array<i64: 1>, scalar_prefetch = 0 : i64, scratch_operands = 0 : i64, tpu.core_type = #tpu.core_type<tc>, window_params = [{transform_indices = @transform_0, window_bounds = array<i64: 8, 256>}, {transform_indices = @transform_1, window_bounds = array<i64: 8, 256>}, {transform_indices = @transform_2, window_bounds = array<i64: 8, 256>}]} {
    %c0 = arith.constant 0 : index
    %c0_0 = arith.constant 0 : index
    %0 = vector.load %arg1[%c0, %c0_0] : memref<8x256xf32, #tpu.memory_space<vmem>>, vector<8x256xf32>
    %c240_i32 = arith.constant 240 : i32
    %1 = tpu.dynamic_rotate %0 by %c240_i32 dim 1 : vector<8x256xf32>, i32 -> vector<8x256xf32>
    %2 = arith.subf %1, %0 : vector<8x256xf32>
    %c0_1 = arith.constant 0 : index
    %c0_2 = arith.constant 0 : index
    %3 = vector.load %arg3[%c0_1, %c0_2] : memref<8x256xf32, #tpu.memory_space<vmem>>, vector<8x256xf32>
    tpu.vector_store %arg3[%c0_1, %c0_2], %2 {strides = array<i32>} : memref<8x256xf32, #tpu.memory_space<vmem>>, vector<8x256xf32>,
    %c255_i32 = arith.constant 255 : i32
    %4 = tpu.dynamic_rotate %0 by %c255_i32 dim 1 : vector<8x256xf32>, i32 -> vector<8x256xf32>
    %c15_i32 = arith.constant 15 : i32
    %5 = tpu.dynamic_rotate %0 by %c15_i32 dim 1 : vector<8x256xf32>, i32 -> vector<8x256xf32>
    %6 = tpu.iota {dimensions = array<i32: 1>} : vector<8x256xi32>
    %c15_i32_3 = arith.constant 15 : i32
    %7 = vector.broadcast %c15_i32_3 : i32 to vector<8x256xi32>
    %8 = arith.andi %6, %7 : vector<8x256xi32>
    %c15_i32_4 = arith.constant 15 : i32
    %9 = vector.broadcast %c15_i32_4 : i32 to vector<8x256xi32>
    %10 = arith.cmpi eq, %8, %9 : vector<8x256xi32>
    %11 = arith.select %10, %5, %4 : vector<8x256xi1>, vector<8x256xf32>
    %12 = arith.subf %11, %0 : vector<8x256xf32>
    %c0_5 = arith.constant 0 : index
    %c0_6 = arith.constant 0 : index
    %13 = vector.load %arg2[%c0_5, %c0_6] : memref<8x256xf32, #tpu.memory_space<vmem>>, vector<8x256xf32>
    tpu.vector_store %arg2[%c0_5, %c0_6], %12 {strides = array<i32>} : memref<8x256xf32, #tpu.memory_space<vmem>>, vector<8x256xf32>,
    return
  }
  func.func @transform_0(%arg0: i32) -> (i32, i32) {
    %c0_i32 = arith.constant 0 : i32
    %c0_i32_0 = arith.constant 0 : i32
    return %arg0, %c0_i32 : i32, i32
  }
  func.func @transform_1(%arg0: i32) -> (i32, i32) {
    %c0_i32 = arith.constant 0 : i32
    %c0_i32_0 = arith.constant 0 : i32
    return %arg0, %c0_i32 : i32, i32
  }
  func.func @transform_2(%arg0: i32) -> (i32, i32) {
    %c0_i32 = arith.constant 0 : i32
    %c0_i32_0 = arith.constant 0 : i32
    return %arg0, %c0_i32 : i32, i32
  }
}

</mosaic_0001>

<llo_original>
// kernel: tpu_custom_call.1
$region0: #{tpu_custom_call.1}
  #allocation0 [shape = 'u32[]', space=smem, size = 0x4, offset = 0x4, fixed_abs, tag = 'smem constant byte address 0x4 - core index']
  #allocation1 [shape = 'u32[144,128]{1,0:T(1,128)}', space=vmem, size = 0x12000, scoped, tag = 'internal scratch']
  %s0 = inlined_call_operand.hbm [shape: f32[8,256], index: 0, kind: input, shape index: {}]
  %s1 = inlined_call_operand.hbm [shape: f32[8,256], index: 1, kind: output, shape index: {0}]
  %s2 = inlined_call_operand.hbm [shape: f32[8,256], index: 2, kind: output, shape index: {1}]
  %3 = xla_tuple %s1, %s2
  %s4 = sld [smem:[#allocation0]]
  $region26: #{tpu_custom_call.1} parent=0
    _
  %s6 = ssub.s32 1, %s4
  %s7 = scalar_select 0, %s6, %s4
  $region1: #{tpu_custom_call.1} parent=0
    #allocation2 [shape = 'u8[8192]{0}', space=vmem, size = 0x2000, scoped, tag = 'input window, operand 0, single buffered']
    #allocation3 [shape = 's32[1]{0}', space=sflag, size = 0x4, scoped, tag = 'scoped memory for tpu_custom_call.1']
    #allocation4 [shape = 's32[1]{0}', space=sflag, size = 0x4, scoped, tag = 'scoped memory for tpu_custom_call.1']
    #allocation5 [shape = 'u8[8192]{0}', space=vmem, size = 0x2000, scoped, tag = 'output window, operand 0, single buffered']
    #allocation6 [shape = 'u8[8192]{0}', space=vmem, size = 0x2000, scoped, tag = 'output window, operand 1, single buffered']
    #allocation7 [shape = 's32[1]{0}', space=sflag, size = 0x4, scoped, tag = 'scoped memory for tpu_custom_call.1']
    %8 = vsyncpa [#allocation3], 0
    %9 = vsyncpa [#allocation4], 0
    %10 = vsyncpa [#allocation7], 0
    // Predicated region
    $region2: #{tpu_custom_call.1} parent=1 // pred_check
      _
    $region3: #{tpu_custom_call.1} parent=1 // pred_check_branch
      %12 = sbr.rel (0) target = $region5
    $region4: #{tpu_custom_call.1} parent=1 // pred_region
      %s14 = ssub.s32 256, 256
      %15 = vsyncadd [#allocation3], %s14
      %s17 = sshll.u32 [#allocation2], 4
      %s18 = int_to_ptr.vmem [resolvable:$true] %s17
      %20 = dma.hbm_to_vmem [thread:$0]  %s0, 256, %s18, [#allocation3]
    $region5: #{tpu_custom_call.1} parent=1 // pred_fallthru
      _
    // Predicated region
    $region6: #{tpu_custom_call.1} parent=1 // pred_check
      _
    $region7: #{tpu_custom_call.1} parent=1 // pred_check_branch
      %22 = sbr.rel (0) target = $region9
    $region8: #{tpu_custom_call.1} parent=1 // pred_region
      %23 = dma.done [#allocation3], 256
    $region9: #{tpu_custom_call.1} parent=1 // pred_fallthru
      _
    %v24 = vld [vmem:[#allocation2] sm:$0xff]
    %v25 = vld [vmem:[#allocation2 + $0x8] sm:$0xff]
    %26 = vrot.lane.b32.xlu0 %v24, 112
    %v27 = vpop.permute.xlu0 %26
    %28 = vrot.lane.b32.xlu0 %v25, 112
    %v29 = vpop.permute.xlu0 %28
    %v30 = vlaneseq
    %v31 = vand.u32 %v30, 127
    %vm32 = vcmp.lt.s32.totalorder %v31, 112
    %v33 = vsel %vm32, %v27, %v29
    %v34 = vsel %vm32, %v29, %v27
    %v35 = vsub.f32 %v33, %v24
    %v36 = vsub.f32 %v34, %v25
    %37 = vst [vmem:[#allocation6] sm:$0xff] %v35
    %38 = vst [vmem:[#allocation6 + $0x8] sm:$0xff] %v36
    %39 = vrot.lane.b32.xlu0 %v24, 127
    %v40 = vpop.permute.xlu0 %39
    %41 = vrot.lane.b32.xlu0 %v25, 127
    %v42 = vpop.permute.xlu0 %41
    %vm43 = vcmp.lt.s32.totalorder %v31, 127
    %v44 = vsel %vm43, %v40, %v42
    %v45 = vsel %vm43, %v42, %v40
    %46 = vrot.lane.b32.xlu0 %v24, 15
    %v47 = vpop.permute.xlu0 %46
    %48 = vrot.lane.b32.xlu0 %v25, 15
    %v49 = vpop.permute.xlu0 %48
    %vm50 = vcmp.lt.s32.totalorder %v31, 15
    %v51 = vsel %vm50, %v47, %v49
    %v52 = vsel %vm50, %v49, %v47
    %v53 = vadd.s32 %v31, 128
    %v54 = vand.u32 %v31, 15
    %v55 = vand.u32 %v53, 15
    %vm56 = vcmp.eq.s32.totalorder %v54, 15
    %vm57 = vcmp.eq.s32.totalorder %v55, 15
    %v58 = vsel %vm56, %v52, %v44
    %v59 = vsel %vm57, %v51, %v45
    %v60 = vsub.f32 %v58, %v24
    %v61 = vsub.f32 %v59, %v25
    %62 = vst [vmem:[#allocation5] sm:$0xff] %v60
    %63 = vst [vmem:[#allocation5 + $0x8] sm:$0xff] %v61
    // Predicated region
    $region10: #{tpu_custom_call.1} parent=1 // pred_check
      _
    $region11: #{tpu_custom_call.1} parent=1 // pred_check_branch
      %65 = sbr.rel (0) target = $region13
    $region12: #{tpu_custom_call.1} parent=1 // pred_region
      %s67 = ssub.s32 256, 256
      %68 = vsyncadd [#allocation4], %s67
      %s70 = sshll.u32 [#allocation5], 4
      %s71 = int_to_ptr.vmem [resolvable:$true] %s70
      %73 = dma.vmem_to_hbm [thread:$0]  %s71, 256, %s1, [#allocation4]
    $region13: #{tpu_custom_call.1} parent=1 // pred_fallthru
      _
    // Predicated region
    $region14: #{tpu_custom_call.1} parent=1 // pred_check
      _
    $region15: #{tpu_custom_call.1} parent=1 // pred_check_branch
      %75 = sbr.rel (0) target = $region17
    $region16: #{tpu_custom_call.1} parent=1 // pred_region
      %s77 = ssub.s32 256, 256
      %78 = vsyncadd [#allocation7], %s77
      %s80 = sshll.u32 [#allocation6], 4
      %s81 = int_to_ptr.vmem [resolvable:$true] %s80
      %83 = dma.vmem_to_hbm [thread:$0]  %s81, 256, %s2, [#allocation7]
    $region17: #{tpu_custom_call.1} parent=1 // pred_fallthru
      _
    // Predicated region
    $region18: #{tpu_custom_call.1} parent=1 // pred_check
      _
    $region19: #{tpu_custom_call.1} parent=1 // pred_check_branch
      %85 = sbr.rel (0) target = $region21
    $region20: #{tpu_custom_call.1} parent=1 // pred_region
      %86 = dma.done [#allocation4], 256
    $region21: #{tpu_custom_call.1} parent=1 // pred_fallthru
      _
    // Predicated region
    $region22: #{tpu_custom_call.1} parent=1 // pred_check
      _
    $region23: #{tpu_custom_call.1} parent=1 // pred_check_branch
      %88 = sbr.rel (0) target = $region25
    $region24: #{tpu_custom_call.1} parent=1 // pred_region
      %89 = dma.done [#allocation7], 256
    $region25: #{tpu_custom_call.1} parent=1 // pred_fallthru
      _
    %90 = vsyncpa [#allocation3], 1
    %91 = vsyncpa [#allocation4], 1
    %92 = vsyncpa [#allocation7], 1

</llo_original>
